<compile_context>
chip_gen: v6e
topology: v6e:2x2x1
jax: 0.10.0
libtpu: 0.0.40
codegen_flags: <defaults>
</compile_context>

<pallas_src>
import functools

import jax
import jax.numpy as jnp
from jax.experimental import pallas as pl
from jax.experimental.pallas import tpu as pltpu


def lr_loss_kernel(x_ref, w_ref, b_ref, y_ref, partial_ref, *, total_b, tb, num_tiles):
    """One batch tile: logits^T = W @ x_tile^T (MXU), stable CE, tile NLL sum out."""
    i = pl.program_id(0)

    # logits^T (C, TB): contract the shared D axis of W (C, D) and x (TB, D)
    # directly on the MXU -- the operand "transpose" happens on-chip, not as a
    # separate HBM pad/transpose pass in the wrapper.
    logits = jax.lax.dot_general(
        w_ref[...], x_ref[...],
        dimension_numbers=(((1,), (1,)), ((), ())),
        preferred_element_type=jnp.float32,
    )
    logits = logits + b_ref[...]                                        # (C,TB) + (C,1)
    C, TB = logits.shape

    # Numerically-stable log-sum-exp over the class (sublane) axis.
    m = jnp.max(logits, axis=0, keepdims=True)                          # (1,TB)
    lse = jnp.log(jnp.sum(jnp.exp(logits - m), axis=0, keepdims=True))  # (1,TB)

    # True-class logit via select (no one-hot cast/mul -> fewer VALU slab ops).
    labels = y_ref[...]                                                 # (1,TB) int32
    row = jax.lax.broadcasted_iota(jnp.int32, (C, TB), 0)               # (C,TB)
    logit_true = jnp.sum(jnp.where(row == labels, logits, 0.0),
                         axis=0, keepdims=True)                         # (1,TB)

    # nll = -(log p_true) = m + lse - logit_true   (fused, no log_probs temp)
    nll = m + lse - logit_true                                          # (1,TB)

    def masked_sum(valid_cols):
        # `valid_cols` is a static Python int: number of real columns in this tile.
        col = jax.lax.broadcasted_iota(jnp.int32, (1, TB), 1)
        return jnp.sum(jnp.where(col < valid_cols, nll, 0.0))

    def write_partial(s):
        # Scatter the scalar tile sum to lane (0,0) of this tile's output block.
        sub = jax.lax.broadcasted_iota(jnp.int32, (1, 8, 128), 1)
        lane = jax.lax.broadcasted_iota(jnp.int32, (1, 8, 128), 2)
        partial_ref[...] = jnp.where((sub == 0) & (lane == 0), s, 0.0)

    valid_last = total_b - (num_tiles - 1) * tb   # static, in (0, tb]
    if valid_last == tb:
        # No batch padding anywhere: no masking work at all.
        write_partial(jnp.sum(nll))
    elif num_tiles == 1:
        write_partial(masked_sum(valid_last))
    else:
        # Only the (single, static) partial last tile pays for the mask.
        @pl.when(i < num_tiles - 1)
        def _full_tile():
            write_partial(jnp.sum(nll))

        @pl.when(i == num_tiles - 1)
        def _last_tile():
            write_partial(masked_sum(valid_last))


def logistic_regression_loss(x, weight, bias, y, *, tb=8192, matmul_dtype=jnp.bfloat16):
    """x: (B,D) f32, weight: (C,D) torch layout, bias: (C,), y: (B,) or (B,1) int.

    Returns the scalar mean cross-entropy loss (f32)."""
    B, D = x.shape
    C = weight.shape[0]
    y = y.reshape(-1)                      # forward() squeezes a (B,1) label tensor

    # Small batches collapse to a single grid step; otherwise tile at `tb`.
    if B <= tb:
        tb_eff = max(128, ((B + 127) // 128) * 128)
        num_tiles = 1
    else:
        tb_eff = tb
        num_tiles = pl.cdiv(B, tb_eff)
    B_pad = num_tiles * tb_eff

    # Cast first (halves any pad-pass bytes), then pad batch to a tile multiple.
    # Padded rows are zeros -> finite logits; they are masked out in-kernel.
    xb = x.astype(matmul_dtype)
    if B_pad != B:
        xb = jnp.pad(xb, ((0, B_pad - B), (0, 0)))
    y2 = jnp.zeros((1, B_pad), jnp.int32).at[0, :B].set(y.astype(jnp.int32))
    w = weight.astype(matmul_dtype)                    # (C,D), resident across grid
    b = bias.astype(jnp.float32).reshape(C, 1)         # (C,1), resident across grid

    kernel = functools.partial(lr_loss_kernel, total_b=B, tb=tb_eff, num_tiles=num_tiles)

    # VMEM budget per step: 2*(2*D*tb) bytes for the double-buffered bf16 x tile
    # plus ~5 f32 (C, tb) intermediates. At D=32, tb=8192 that is ~2.5 MiB --
    # far below the 16/32/32 MiB scoped defaults on v5e/v6e/v7x (re-derive and
    # set vmem_limit_bytes only if D*tb grows large, esp. on v7x's 64 MiB VMEM).
    partials = pl.pallas_call(
        kernel,
        out_shape=jax.ShapeDtypeStruct((num_tiles, 8, 128), jnp.float32),
        grid=(num_tiles,),
        in_specs=[
            pl.BlockSpec((tb_eff, D), lambda i: (i, 0)),   # x tile, pipelined over batch
            pl.BlockSpec((C, D), lambda i: (0, 0)),        # W resident
            pl.BlockSpec((C, 1), lambda i: (0, 0)),        # bias resident
            pl.BlockSpec((1, tb_eff), lambda i: (0, i)),   # lane-dense labels tile
        ],
        out_specs=pl.BlockSpec((1, 8, 128), lambda i: (i, 0, 0)),
        compiler_params=pltpu.CompilerParams(
            # Independent per-tile partial sums (no cross-step accumulator) ->
            # the batch axis is truly parallel; v7x can shard it across both TCs.
            dimension_semantics=("parallel",),
        ),
    )(xb, w, b, y2)

    # CrossEntropyLoss(size_average=True): mean over the *global* batch.
    return jnp.sum(partials) / jnp.float32(B)


if __name__ == "__main__":
    # Small shapes consistent with the module. batch=300 exercises the padded,
    # single-tile fast path with the default tb; a second call with tb=128
    # exercises the multi-tile grid (3 tiles, last one partial and masked).
    input_dim = 32
    n_class = 8
    batch = 300

    key = jax.random.PRNGKey(0)
    kx, ky, kw, kb = jax.random.split(key, 4)

    # torch.nn.Linear-style init: uniform(-1/sqrt(D), 1/sqrt(D)), torch layout (C,D).
    bound = 1.0 / (float(input_dim) ** 0.5)
    weight = jax.random.uniform(kw, (n_class, input_dim), jnp.float32, -bound, bound)
    bias = jax.random.uniform(kb, (n_class,), jnp.float32, -bound, bound)

    x = jax.random.normal(kx, (batch, input_dim), jnp.float32)
    y = jax.random.randint(ky, (batch, 1), 0, n_class, jnp.int32)  # (B,1); gets squeezed

    loss_single = logistic_regression_loss(x, weight, bias, y)            # 1 grid step
    loss_tiled = logistic_regression_loss(x, weight, bias, y, tb=128)     # 3 grid steps
    jax.block_until_ready(loss_single)
    jax.block_until_ready(loss_tiled)

    # Reference 1: same bf16-matmul / f32-accumulate path as the kernel (tight).
    logits_bf16 = jnp.dot(
        x.astype(jnp.bfloat16), weight.T.astype(jnp.bfloat16),
        preferred_element_type=jnp.float32,
    ) + bias
    ref_bf16 = jnp.mean(
        -jnp.take_along_axis(jax.nn.log_softmax(logits_bf16, axis=-1), y, axis=1)
    )
    assert jnp.allclose(loss_single, ref_bf16, atol=1e-3, rtol=1e-3), (loss_single, ref_bf16)
    assert jnp.allclose(loss_tiled, ref_bf16, atol=1e-3, rtol=1e-3), (loss_tiled, ref_bf16)

    # Reference 2: full-f32 PyTorch-equivalent forward (loose; bf16 matmul approx).
    logits_f32 = x @ weight.T + bias
    ref_f32 = jnp.mean(
        -jnp.take_along_axis(jax.nn.log_softmax(logits_f32, axis=-1), y, axis=1)
    )
    assert jnp.allclose(loss_single, ref_f32, atol=5e-2), (loss_single, ref_f32)
    assert jnp.allclose(loss_tiled, ref_f32, atol=5e-2), (loss_tiled, ref_f32)

    print("KERNEL_OK")
</pallas_src>

<mosaic_0001>
module attributes {stable_mosaic.version = 11 : i64} {
  func.func @lr_loss_kernel(%arg0: i32, %arg1: memref<384x32xbf16, #tpu.memory_space<vmem>>, %arg2: memref<8x32xbf16, #tpu.memory_space<vmem>>, %arg3: memref<8x1xf32, #tpu.memory_space<vmem>>, %arg4: memref<1x384xi32, #tpu.memory_space<vmem>>, %arg5: memref<1x8x128xf32, #tpu.memory_space<vmem>>) attributes {dimension_semantics = [#tpu.dimension_semantics<parallel>], iteration_bounds = array<i64: 1>, scalar_prefetch = 0 : i64, scratch_operands = 0 : i64, tpu.core_type = #tpu.core_type<tc>, window_params = [{transform_indices = @transform_0, window_bounds = array<i64: 384, 32>}, {pipeline_mode = #tpu.pipeline_mode<synchronous>, transform_indices = @transform_1, window_bounds = array<i64: 8, 32>}, {pipeline_mode = #tpu.pipeline_mode<synchronous>, transform_indices = @transform_2, window_bounds = array<i64: 8, 1>}, {transform_indices = @transform_3, window_bounds = array<i64: 1, 384>}, {transform_indices = @transform_4, window_bounds = array<i64: 1, 8, 128>}]} {
    %c0 = arith.constant 0 : index
    %c0_0 = arith.constant 0 : index
    %0 = vector.load %arg2[%c0, %c0_0] : memref<8x32xbf16, #tpu.memory_space<vmem>>, vector<8x32xbf16>
    %c0_1 = arith.constant 0 : index
    %c0_2 = arith.constant 0 : index
    %1 = vector.load %arg1[%c0_1, %c0_2] : memref<384x32xbf16, #tpu.memory_space<vmem>>, vector<384x32xbf16>
    %cst = arith.constant dense<0.000000e+00> : vector<8x384xf32>
    %2 = tpu.matmul %0, %1, %cst {dimension_numbers = #tpu.dot_dimension_numbers<[1], [1], [0], [0], [0, 0, 1, 0], [], []>} : vector<8x32xbf16>, vector<384x32xbf16>, vector<8x384xf32> -> vector<8x384xf32>
    %c0_3 = arith.constant 0 : index
    %c0_4 = arith.constant 0 : index
    %3 = vector.load %arg3[%c0_3, %c0_4] : memref<8x1xf32, #tpu.memory_space<vmem>>, vector<8x1xf32>
    %4 = vector.broadcast %3 : vector<8x1xf32> to vector<8x384xf32>
    %5 = arith.addf %2, %4 : vector<8x384xf32>
    %cst_5 = arith.constant dense<0xFF800000> : vector<384xf32>
    %6 = vector.multi_reduction <maximumf>, %5, %cst_5 [0] : vector<8x384xf32> to vector<384xf32>
    %7 = vector.shape_cast %6 : vector<384xf32> to vector<1x384xf32>
    %8 = vector.broadcast %7 : vector<1x384xf32> to vector<8x384xf32>
    %9 = arith.subf %5, %8 : vector<8x384xf32>
    %10 = math.exp %9 : vector<8x384xf32>
    %cst_6 = arith.constant dense<0.000000e+00> : vector<384xf32>
    %11 = vector.multi_reduction <add>, %10, %cst_6 [0] : vector<8x384xf32> to vector<384xf32>
    %12 = vector.shape_cast %11 : vector<384xf32> to vector<1x384xf32>
    %13 = math.log %12 : vector<1x384xf32>
    %c0_7 = arith.constant 0 : index
    %c0_8 = arith.constant 0 : index
    %14 = vector.load %arg4[%c0_7, %c0_8] : memref<1x384xi32, #tpu.memory_space<vmem>>, vector<1x384xi32>
    %15 = tpu.iota {dimensions = array<i32: 0>} : vector<8x384xi32>
    %16 = vector.broadcast %14 : vector<1x384xi32> to vector<8x384xi32>
    %17 = arith.cmpi eq, %15, %16 : vector<8x384xi32>
    %cst_9 = arith.constant 0.000000e+00 : f32
    %18 = vector.broadcast %cst_9 : f32 to vector<8x384xf32>
    %19 = arith.select %17, %5, %18 : vector<8x384xi1>, vector<8x384xf32>
    %cst_10 = arith.constant dense<0.000000e+00> : vector<384xf32>
    %20 = vector.multi_reduction <add>, %19, %cst_10 [0] : vector<8x384xf32> to vector<384xf32>
    %21 = vector.shape_cast %20 : vector<384xf32> to vector<1x384xf32>
    %22 = arith.addf %7, %13 : vector<1x384xf32>
    %23 = arith.subf %22, %21 : vector<1x384xf32>
    %24 = tpu.iota {dimensions = array<i32: 1>} : vector<1x384xi32>
    %c300_i32 = arith.constant 300 : i32
    %25 = vector.broadcast %c300_i32 : i32 to vector<1x384xi32>
    %26 = arith.cmpi slt, %24, %25 : vector<1x384xi32>
    %cst_11 = arith.constant 0.000000e+00 : f32
    %27 = vector.broadcast %cst_11 : f32 to vector<1x384xf32>
    %28 = arith.select %26, %23, %27 : vector<1x384xi1>, vector<1x384xf32>
    %29 = vector.shape_cast %28 : vector<1x384xf32> to vector<1x1x384xf32>
    %cst_12 = arith.constant dense<0.000000e+00> : vector<1xf32>
    %30 = vector.multi_reduction <add>, %29, %cst_12 [1, 2] : vector<1x1x384xf32> to vector<1xf32>
    %31 = vector.shape_cast %30 : vector<1xf32> to vector<1x1x1xf32>
    %32 = vector.extract %31[0, 0, 0] : f32 from vector<1x1x1xf32>
    %33 = tpu.iota {dimensions = array<i32: 1>} : vector<1x8x128xi32>
    %34 = tpu.iota {dimensions = array<i32: 2>} : vector<1x8x128xi32>
    %c0_i32 = arith.constant 0 : i32
    %35 = vector.broadcast %c0_i32 : i32 to vector<1x8x128xi32>
    %36 = arith.cmpi eq, %33, %35 : vector<1x8x128xi32>
    %c0_i32_13 = arith.constant 0 : i32
    %37 = vector.broadcast %c0_i32_13 : i32 to vector<1x8x128xi32>
    %38 = arith.cmpi eq, %34, %37 : vector<1x8x128xi32>
    %39 = arith.andi %36, %38 : vector<1x8x128xi1>
    %cst_14 = arith.constant 0.000000e+00 : f32
    %40 = vector.broadcast %32 : f32 to vector<1x8x128xf32>
    %41 = vector.broadcast %cst_14 : f32 to vector<1x8x128xf32>
    %42 = arith.select %39, %40, %41 : vector<1x8x128xi1>, vector<1x8x128xf32>
    %c0_15 = arith.constant 0 : index
    %c0_16 = arith.constant 0 : index
    %c0_17 = arith.constant 0 : index
    %43 = vector.load %arg5[%c0_15, %c0_16, %c0_17] : memref<1x8x128xf32, #tpu.memory_space<vmem>>, vector<1x8x128xf32>
    tpu.vector_store %arg5[%c0_15, %c0_16, %c0_17], %42 {strides = array<i32>} : memref<1x8x128xf32, #tpu.memory_space<vmem>>, vector<1x8x128xf32>,
    return
  }
  func.func @transform_0(%arg0: i32) -> (i32, i32) {
    %c0_i32 = arith.constant 0 : i32
    %c0_i32_0 = arith.constant 0 : i32
    return %arg0, %c0_i32 : i32, i32
  }
  func.func @transform_1(%arg0: i32) -> (i32, i32) {
    %c0_i32 = arith.constant 0 : i32
    %c0_i32_0 = arith.constant 0 : i32
    %c0_i32_1 = arith.constant 0 : i32
    return %c0_i32, %c0_i32_0 : i32, i32
  }
  func.func @transform_2(%arg0: i32) -> (i32, i32) {
    %c0_i32 = arith.constant 0 : i32
    %c0_i32_0 = arith.constant 0 : i32
    %c0_i32_1 = arith.constant 0 : i32
    return %c0_i32, %c0_i32_0 : i32, i32
  }
  func.func @transform_3(%arg0: i32) -> (i32, i32) {
    %c0_i32 = arith.constant 0 : i32
    %c0_i32_0 = arith.constant 0 : i32
    return %c0_i32, %arg0 : i32, i32
  }
  func.func @transform_4(%arg0: i32) -> (i32, i32, i32) {
    %c0_i32 = arith.constant 0 : i32
    %c0_i32_0 = arith.constant 0 : i32
    %c0_i32_1 = arith.constant 0 : i32
    return %arg0, %c0_i32, %c0_i32_0 : i32, i32, i32
  }
}

</mosaic_0001>

<llo_original>
// kernel: tpu_custom_call.1
$region0: #{tpu_custom_call.1}
  #allocation0 [shape = 'u32[]', space=smem, size = 0x4, offset = 0x4, fixed_abs, tag = 'smem constant byte address 0x4 - core index']
  #allocation1 [shape = 'u32[144,128]{1,0:T(1,128)}', space=vmem, size = 0x12000, scoped, tag = 'internal scratch']
  %s0 = inlined_call_operand.vmem [shape: bf16[384,32], index: 0, kind: input, shape index: {}]
  %s1 = inlined_call_operand.vmem [shape: bf16[8,32], index: 1, kind: input, shape index: {}]
  %s2 = inlined_call_operand.vmem [shape: f32[8,1], index: 2, kind: input, shape index: {}]
  %s3 = inlined_call_operand.vmem [shape: s32[1,384], index: 3, kind: input, shape index: {}]
  %s4 = inlined_call_operand.hbm [shape: f32[1,8,128], index: 4, kind: output, shape index: {}]
  %s5 = sld [smem:[#allocation0]]
  $region26: #{tpu_custom_call.1} parent=0
    _
  %s7 = ssub.s32 1, %s5
  %s8 = scalar_select 0, %s7, %s5
  $region1: #{tpu_custom_call.1} parent=0
    #allocation2 [shape = 'u8[4096]{0}', space=vmem, size = 0x1000, scoped, tag = 'output window, operand 0, single buffered']
    #allocation3 [shape = 's32[1]{0}', space=sflag, size = 0x4, scoped, tag = 'scoped memory for tpu_custom_call.1']
    %9 = vsyncpa [#allocation3], 0
    // Predicated region
    $region2: #{tpu_custom_call.1} parent=1 // pred_check
      _
    $region3: #{tpu_custom_call.1} parent=1 // pred_check_branch
      %11 = sbr.rel (0) target = $region5
    $region4: #{tpu_custom_call.1} parent=1 // pred_region
      _
    $region5: #{tpu_custom_call.1} parent=1 // pred_fallthru
      _
    // Predicated region
    $region6: #{tpu_custom_call.1} parent=1 // pred_check
      _
    $region7: #{tpu_custom_call.1} parent=1 // pred_check_branch
      %13 = sbr.rel (0) target = $region9
    $region8: #{tpu_custom_call.1} parent=1 // pred_region
      _
    $region9: #{tpu_custom_call.1} parent=1 // pred_fallthru
      _
    // Predicated region
    $region10: #{tpu_custom_call.1} parent=1 // pred_check
      _
    $region11: #{tpu_custom_call.1} parent=1 // pred_check_branch
      %15 = sbr.rel (0) target = $region13
    $region12: #{tpu_custom_call.1} parent=1 // pred_region
      _
    $region13: #{tpu_custom_call.1} parent=1 // pred_fallthru
      _
    // Predicated region
    $region14: #{tpu_custom_call.1} parent=1 // pred_check
      _
    $region15: #{tpu_custom_call.1} parent=1 // pred_check_branch
      %17 = sbr.rel (0) target = $region17
    $region16: #{tpu_custom_call.1} parent=1 // pred_region
      _
    $region17: #{tpu_custom_call.1} parent=1 // pred_fallthru
      _
    %v19 = vld [vmem:[%s1] sm:$0xf]
    %v20 = vld [vmem:[%s0] sm:$0xf]
    %v21 = vld [vmem:[%s0 + $0x4] sm:$0xf]
    %v22 = vld [vmem:[%s0 + $0x8] sm:$0xf]
    %v23 = vld [vmem:[%s0 + $0xc] sm:$0xf]
    %v24 = vld [vmem:[%s0 + $0x10] sm:$0xf]
    %v25 = vld [vmem:[%s0 + $0x14] sm:$0xf]
    %v26 = vld [vmem:[%s0 + $0x18] sm:$0xf]
    %v27 = vld [vmem:[%s0 + $0x1c] sm:$0xf]
    %v28 = vld [vmem:[%s0 + $0x20] sm:$0xf]
    %v29 = vld [vmem:[%s0 + $0x24] sm:$0xf]
    %v30 = vld [vmem:[%s0 + $0x28] sm:$0xf]
    %v31 = vld [vmem:[%s0 + $0x2c] sm:$0xf]
    %v32 = vld [vmem:[%s0 + $0x30] sm:$0xf]
    %v33 = vld [vmem:[%s0 + $0x34] sm:$0xf]
    %v34 = vld [vmem:[%s0 + $0x38] sm:$0xf]
    %v35 = vld [vmem:[%s0 + $0x3c] sm:$0xf]
    %v36 = vld [vmem:[%s0 + $0x40] sm:$0xf]
    %v37 = vld [vmem:[%s0 + $0x44] sm:$0xf]
    %v38 = vld [vmem:[%s0 + $0x48] sm:$0xf]
    %v39 = vld [vmem:[%s0 + $0x4c] sm:$0xf]
    %v40 = vld [vmem:[%s0 + $0x50] sm:$0xf]
    %v41 = vld [vmem:[%s0 + $0x54] sm:$0xf]
    %v42 = vld [vmem:[%s0 + $0x58] sm:$0xf]
    %v43 = vld [vmem:[%s0 + $0x5c] sm:$0xf]
    %v44 = vld [vmem:[%s0 + $0x60] sm:$0xf]
    %v45 = vld [vmem:[%s0 + $0x64] sm:$0xf]
    %v46 = vld [vmem:[%s0 + $0x68] sm:$0xf]
    %v47 = vld [vmem:[%s0 + $0x6c] sm:$0xf]
    %v48 = vld [vmem:[%s0 + $0x70] sm:$0xf]
    %v49 = vld [vmem:[%s0 + $0x74] sm:$0xf]
    %v50 = vld [vmem:[%s0 + $0x78] sm:$0xf]
    %v51 = vld [vmem:[%s0 + $0x7c] sm:$0xf]
    %v52 = vld [vmem:[%s0 + $0x80] sm:$0xf]
    %v53 = vld [vmem:[%s0 + $0x84] sm:$0xf]
    %v54 = vld [vmem:[%s0 + $0x88] sm:$0xf]
    %v55 = vld [vmem:[%s0 + $0x8c] sm:$0xf]
    %v56 = vld [vmem:[%s0 + $0x90] sm:$0xf]
    %v57 = vld [vmem:[%s0 + $0x94] sm:$0xf]
    %v58 = vld [vmem:[%s0 + $0x98] sm:$0xf]
    %v59 = vld [vmem:[%s0 + $0x9c] sm:$0xf]
    %v60 = vld [vmem:[%s0 + $0xa0] sm:$0xf]
    %v61 = vld [vmem:[%s0 + $0xa4] sm:$0xf]
    %v62 = vld [vmem:[%s0 + $0xa8] sm:$0xf]
    %v63 = vld [vmem:[%s0 + $0xac] sm:$0xf]
    %v64 = vld [vmem:[%s0 + $0xb0] sm:$0xf]
    %v65 = vld [vmem:[%s0 + $0xb4] sm:$0xf]
    %v66 = vld [vmem:[%s0 + $0xb8] sm:$0xf]
    %v67 = vld [vmem:[%s0 + $0xbc] sm:$0xf]
    %v68 = vld [vmem:[%s2] sm:$0xff]
    %70 = vset.pattern.permute.xlu0 0
    %71 = vperm.xlu0 %70, %v68
    %v72 = vpop.permute.xlu0 %71
    %v122 = vunpack.c.l.b16 %v20
    %v123 = vunpack.c.l.b16 %v21
    %v124 = vunpack.c.l.b16 %v22
    %v125 = vunpack.c.l.b16 %v23
    %v126 = vunpack.c.l.b16 %v24
    %v127 = vunpack.c.l.b16 %v25
    %v128 = vunpack.c.l.b16 %v26
    %v129 = vunpack.c.l.b16 %v27
    %v130 = vunpack.c.l.b16 %v28
    %v131 = vunpack.c.l.b16 %v29
    %v132 = vunpack.c.l.b16 %v30
    %v133 = vunpack.c.l.b16 %v31
    %v134 = vunpack.c.l.b16 %v32
    %v135 = vunpack.c.l.b16 %v33
    %v136 = vunpack.c.l.b16 %v34
    %v137 = vunpack.c.l.b16 %v35
    %v138 = vunpack.c.l.b16 %v36
    %v139 = vunpack.c.l.b16 %v37
    %v140 = vunpack.c.l.b16 %v38
    %v141 = vunpack.c.l.b16 %v39
    %v142 = vunpack.c.l.b16 %v40
    %v143 = vunpack.c.l.b16 %v41
    %v144 = vunpack.c.l.b16 %v42
    %v145 = vunpack.c.l.b16 %v43
    %v146 = vunpack.c.l.b16 %v44
    %v147 = vunpack.c.l.b16 %v45
    %v148 = vunpack.c.l.b16 %v46
    %v149 = vunpack.c.l.b16 %v47
    %v150 = vunpack.c.l.b16 %v48
    %v151 = vunpack.c.l.b16 %v49
    %v152 = vunpack.c.l.b16 %v50
    %v153 = vunpack.c.l.b16 %v51
    %v154 = vunpack.c.l.b16 %v52
    %v155 = vunpack.c.l.b16 %v53
    %v156 = vunpack.c.l.b16 %v54
    %v157 = vunpack.c.l.b16 %v55
    %v158 = vunpack.c.l.b16 %v56
    %v159 = vunpack.c.l.b16 %v57
    %v160 = vunpack.c.l.b16 %v58
    %v161 = vunpack.c.l.b16 %v59
    %v162 = vunpack.c.l.b16 %v60
    %v163 = vunpack.c.l.b16 %v61
    %v164 = vunpack.c.l.b16 %v62
    %v165 = vunpack.c.l.b16 %v63
    %v166 = vunpack.c.l.b16 %v64
    %v167 = vunpack.c.l.b16 %v65
    %v168 = vunpack.c.l.b16 %v66
    %v169 = vunpack.c.l.b16 %v67
    %v170 = vpack.c.b16 %v123, %v122
    %v171 = vpack.c.b16 %v125, %v124
    %v172 = vpack.c.b16 %v127, %v126
    %v173 = vpack.c.b16 %v129, %v128
    %v174 = vpack.c.b16 %v131, %v130
    %v175 = vpack.c.b16 %v133, %v132
    %v176 = vpack.c.b16 %v135, %v134
    %v177 = vpack.c.b16 %v137, %v136
    %v178 = vpack.c.b16 %v139, %v138
    %v179 = vpack.c.b16 %v141, %v140
    %v180 = vpack.c.b16 %v143, %v142
    %v181 = vpack.c.b16 %v145, %v144
    %v182 = vpack.c.b16 %v147, %v146
    %v183 = vpack.c.b16 %v149, %v148
    %v184 = vpack.c.b16 %v151, %v150
    %v185 = vpack.c.b16 %v153, %v152
    %v186 = vpack.c.b16 %v155, %v154
    %v187 = vpack.c.b16 %v157, %v156
    %v188 = vpack.c.b16 %v159, %v158
    %v189 = vpack.c.b16 %v161, %v160
    %v190 = vpack.c.b16 %v163, %v162
    %v191 = vpack.c.b16 %v165, %v164
    %v192 = vpack.c.b16 %v167, %v166
    %v193 = vpack.c.b16 %v169, %v168
    %vm194 = vcmask 261120
    %v196 = vsel %vm194, %v19, 0
    %v199 = vsel %vm194, %v170, 0
    %v202 = vsel %vm194, %v171, 0
    %v205 = vsel %vm194, %v172, 0
    %v208 = vsel %vm194, %v173, 0
    %v211 = vsel %vm194, %v174, 0
    %v214 = vsel %vm194, %v175, 0
    %v217 = vsel %vm194, %v176, 0
    %v220 = vsel %vm194, %v177, 0
    %v223 = vsel %vm194, %v178, 0
    %v226 = vsel %vm194, %v179, 0
    %v229 = vsel %vm194, %v180, 0
    %v232 = vsel %vm194, %v181, 0
    %v235 = vsel %vm194, %v182, 0
    %v238 = vsel %vm194, %v183, 0
    %v241 = vsel %vm194, %v184, 0
    %v244 = vsel %vm194, %v185, 0
    %v247 = vsel %vm194, %v186, 0
    %v250 = vsel %vm194, %v187, 0
    %v253 = vsel %vm194, %v188, 0
    %v256 = vsel %vm194, %v189, 0
    %v259 = vsel %vm194, %v190, 0
    %v262 = vsel %vm194, %v191, 0
    %v265 = vsel %vm194, %v192, 0
    %v268 = vsel %vm194, %v193, 0
    %270 = vmatprep.subr.bf16.mxu0 0
    %271 = vmatpush1.bf16.xpose.msra.mxu0 %v220
    %272 = vmatprep.subr.bf16.mxu0 0
    %273 = vmatpush1.bf16.xpose.msra.mxu0 %v217
    %274 = vmatprep.subr.bf16.mxu0 0
    %275 = vmatpush1.bf16.xpose.msra.mxu0 %v214
    %276 = vmatprep.subr.bf16.mxu0 0
    %277 = vmatpush1.bf16.xpose.msra.mxu0 %v211
    %278 = vmatprep.subr.bf16.mxu0 0
    %279 = vmatpush1.bf16.xpose.msra.mxu0 %v208
    %280 = vmatprep.subr.bf16.mxu0 0
    %281 = vmatpush1.bf16.xpose.msra.mxu0 %v205
    %282 = vmatprep.subr.bf16.mxu0 0
    %283 = vmatpush1.bf16.xpose.msra.mxu0 %v202
    %284 = vmatprep.subr.bf16.mxu0 0
    %285 = vmatpush1.bf16.xpose.msra.mxu0 %v199
    %286 = vmatprep.subr.bf16.mxu0 0
    %287 = vmatpush2.bf16.xpose.msra.mxu0 %v244
    %288 = vmatprep.subr.bf16.mxu0 0
    %289 = vmatpush2.bf16.xpose.msra.mxu0 %v241
    %290 = vmatprep.subr.bf16.mxu0 0
    %291 = vmatpush2.bf16.xpose.msra.mxu0 %v238
    %292 = vmatprep.subr.bf16.mxu0 0
    %293 = vmatpush2.bf16.xpose.msra.mxu0 %v235
    %294 = vmatprep.subr.bf16.mxu0 0
    %295 = vmatpush2.bf16.xpose.msra.mxu0 %v232
    %296 = vmatprep.subr.bf16.mxu0 0
    %297 = vmatpush2.bf16.xpose.msra.mxu0 %v229
    %298 = vmatprep.subr.bf16.mxu0 0
    %299 = vmatpush2.bf16.xpose.msra.mxu0 %v226
    %300 = vmatprep.subr.bf16.mxu0 0
    %301 = vmatpush2.bf16.xpose.msra.mxu0 %v223
    %302 = vmatprep.mubr.bf16.mxu0 0
    %303 = vmatmul.mubr.bf16.gmra.mxu0 %v196
    %v304 = vpop.f32.mrf.mxu0
    %v305 = vadd.f32 %v72, %v304
    %v306 = vpop.f32.mrf.mxu0
    %v307 = vadd.f32 %v72, %v306
    %v308 = vpop.f32.mrf.mxu0
    %v309 = vpop.f32.mrf.mxu0
    %310 = vdwg.mxu0
    %311 = vmatprep.subr.bf16.mxu0 0
    %312 = vmatpush1.bf16.xpose.msra.mxu0 %v268
    %313 = vmatprep.subr.bf16.mxu0 0
    %314 = vmatpush1.bf16.xpose.msra.mxu0 %v265
    %315 = vmatprep.subr.bf16.mxu0 0
    %316 = vmatpush1.bf16.xpose.msra.mxu0 %v262
    %317 = vmatprep.subr.bf16.mxu0 0
    %318 = vmatpush1.bf16.xpose.msra.mxu0 %v259
    %319 = vmatprep.subr.bf16.mxu0 0
    %320 = vmatpush1.bf16.xpose.msra.mxu0 %v256
    %321 = vmatprep.subr.bf16.mxu0 0
    %322 = vmatpush1.bf16.xpose.msra.mxu0 %v253
    %323 = vmatprep.subr.bf16.mxu0 0
    %324 = vmatpush1.bf16.xpose.msra.mxu0 %v250
    %325 = vmatprep.subr.bf16.mxu0 0
    %326 = vmatpush1.bf16.xpose.msra.mxu0 %v247
    %327 = vmatprep.subr.bf16.mxu0 0
    %328 = vmatpush2.bf16.xpose.msra.mxu0 0
    %329 = vmatprep.subr.bf16.mxu0 0
    %330 = vmatpush2.bf16.xpose.msra.mxu0 0
    %331 = vmatprep.subr.bf16.mxu0 0
    %332 = vmatpush2.bf16.xpose.msra.mxu0 0
    %333 = vmatprep.subr.bf16.mxu0 0
    %334 = vmatpush2.bf16.xpose.msra.mxu0 0
    %335 = vmatprep.subr.bf16.mxu0 0
    %336 = vmatpush2.bf16.xpose.msra.mxu0 0
    %337 = vmatprep.subr.bf16.mxu0 0
    %338 = vmatpush2.bf16.xpose.msra.mxu0 0
    %339 = vmatprep.subr.bf16.mxu0 0
    %340 = vmatpush2.bf16.xpose.msra.mxu0 0
    %341 = vmatprep.subr.bf16.mxu0 0
    %342 = vmatpush2.bf16.xpose.msra.mxu0 0
    %343 = vmatprep.mubr.bf16.mxu0 0
    %344 = vmatmul.mubr.bf16.gmra.mxu0 %v196
    %v345 = vpop.f32.mrf.mxu0
    %v346 = vadd.f32 %v72, %v345
    %v347 = vpop.f32.mrf.mxu0
    %v348 = vpop.f32.mrf.mxu0
    %v349 = vpop.f32.mrf.mxu0
    %350 = vdwg.mxu0
    %v351 = vrot.slane %v305, 4
    %v352 = vmax.f32 %v305, %v351
    %v353 = vrot.slane %v352, 2
    %v354 = vmax.f32 %v352, %v353
    %v355 = vrot.slane %v354, 1
    %v356 = vmax.f32 %v354, %v355
    %v357 = vrot.slane %v307, 4
    %v358 = vmax.f32 %v307, %v357
    %v359 = vrot.slane %v358, 2
    %v360 = vmax.f32 %v358, %v359
    %v361 = vrot.slane %v360, 1
    %v362 = vmax.f32 %v360, %v361
    %v363 = vrot.slane %v346, 4
    %v364 = vmax.f32 %v346, %v363
    %v365 = vrot.slane %v364, 2
    %v366 = vmax.f32 %v364, %v365
    %v367 = vrot.slane %v366, 1
    %v368 = vmax.f32 %v366, %v367
    %v369 = vsub.f32 %v305, %v356
    %v370 = vsub.f32 %v307, %v362
    %v371 = vsub.f32 %v346, %v368
    %v372 = vmul.f32 %v369, 1.442695
    %v373 = vpow.pop %v372
    %v374 = vmul.f32 %v370, 1.442695
    %v375 = vpow.pop %v374
    %v376 = vmul.f32 %v371, 1.442695
    %v377 = vpow.pop %v376
    %v378 = vrot.slane %v373, 4
    %v379 = vadd.f32 %v373, %v378
    %v380 = vrot.slane %v379, 2
    %v381 = vadd.f32 %v379, %v380
    %v382 = vrot.slane %v381, 1
    %v383 = vadd.f32 %v381, %v382
    %v384 = vrot.slane %v375, 4
    %v385 = vadd.f32 %v375, %v384
    %v386 = vrot.slane %v385, 2
    %v387 = vadd.f32 %v385, %v386
    %v388 = vrot.slane %v387, 1
    %v389 = vadd.f32 %v387, %v388
    %v390 = vrot.slane %v377, 4
    %v391 = vadd.f32 %v377, %v390
    %v392 = vrot.slane %v391, 2
    %v393 = vadd.f32 %v391, %v392
    %v394 = vrot.slane %v393, 1
    %v395 = vadd.f32 %v393, %v394
    %v396 = vlog2.pop %v383
    %v397 = vmul.f32 %v396, 0.6931472
    %v398 = vlog2.pop %v389
    %v399 = vmul.f32 %v398, 0.6931472
    %v400 = vlog2.pop %v395
    %v401 = vmul.f32 %v400, 0.6931472
    %v402 = vld [vmem:[%s3] sm:$0x7]
    %v403 = vlaneseq
    %v404 = vshrl.u32 %v403, 7
    %v405 = vlaneseq
    %v406 = vshrl.u32 %v405, 7
    %v407 = vsub.s32 0, %v406
    %v408 = vrot.slane %v402, %v407
    %v409 = vlaneseq
    %v410 = vshrl.u32 %v409, 7
    %v411 = vsub.s32 1, %v410
    %v412 = vrot.slane %v402, %v411
    %v413 = vlaneseq
    %v414 = vshrl.u32 %v413, 7
    %v415 = vsub.s32 2, %v414
    %v416 = vrot.slane %v402, %v415
    %vm417 = vcmp.eq.s32.totalorder %v404, %v408
    %vm418 = vcmp.eq.s32.totalorder %v404, %v412
    %vm419 = vcmp.eq.s32.totalorder %v404, %v416
    %v420 = vsel %vm417, %v305, 0.0
    %v421 = vsel %vm418, %v307, 0.0
    %v422 = vsel %vm419, %v346, 0.0
    %v423 = vrot.slane %v420, 4
    %v424 = vadd.f32 %v420, %v423
    %v425 = vrot.slane %v424, 2
    %v426 = vadd.f32 %v424, %v425
    %v427 = vrot.slane %v426, 1
    %v428 = vadd.f32 %v426, %v427
    %v429 = vrot.slane %v421, 4
    %v430 = vadd.f32 %v421, %v429
    %v431 = vrot.slane %v430, 2
    %v432 = vadd.f32 %v430, %v431
    %v433 = vrot.slane %v432, 1
    %v434 = vadd.f32 %v432, %v433
    %v435 = vrot.slane %v422, 4
    %v436 = vadd.f32 %v422, %v435
    %v437 = vrot.slane %v436, 2
    %v438 = vadd.f32 %v436, %v437
    %v439 = vrot.slane %v438, 1
    %v440 = vadd.f32 %v438, %v439
    %v441 = vadd.f32 %v356, %v397
    %v442 = vadd.f32 %v362, %v399
    %v443 = vadd.f32 %v368, %v401
    %v444 = vsub.f32 %v441, %v428
    %v445 = vsub.f32 %v442, %v434
    %v446 = vsub.f32 %v443, %v440
    %v447 = vlaneseq
    %v448 = vand.u32 %v447, 127
    %v449 = vadd.s32 %v448, 128
    %v450 = vadd.s32 %v448, 256
    %vm451 = vcmp.lt.s32.totalorder %v448, 300
    %vm452 = vcmp.lt.s32.totalorder %v449, 300
    %vm453 = vcmp.lt.s32.totalorder %v450, 300
    %v454 = vsel %vm451, %v444, 0.0
    %v455 = vsel %vm452, %v445, 0.0
    %v456 = vsel %vm453, %v446, 0.0
    %vm457 = vcmask 1040384
    %v458 = vsel %vm457, %v454, 0.0
    %v459 = vsel %vm457, %v455, 0.0
    %v460 = vadd.f32 %v458, %v459
    %v461 = vsel %vm457, %v456, 0.0
    %v462 = vadd.f32 %v460, %v461
    %463 = vadd.xlane.f32.xlu0 %v462
    %v464 = vpop.xlane.xlu0 %463
    %v465 = vrot.slane %v464, 4
    %v466 = vadd.f32 %v464, %v465
    %v467 = vrot.slane %v466, 2
    %v468 = vadd.f32 %v466, %v467
    %v469 = vrot.slane %v468, 1
    %v470 = vadd.f32 %v468, %v469
    %s471 = vtos %v470
    %vm472 = vcmp.eq.s32.totalorder %v404, 0
    %vm473 = vcmp.eq.s32.totalorder %v448, 0
    %vm474 = vmand %vm472, %vm473
    %v475 = vstv %s471
    %v476 = vsel %vm474, %v475, 0.0
    %477 = vst [vmem:[#allocation2] sm:$0xff] %v476
    // Predicated region
    $region18: #{tpu_custom_call.1} parent=1 // pred_check
      _
    $region19: #{tpu_custom_call.1} parent=1 // pred_check_branch
      %479 = sbr.rel (0) target = $region21
    $region20: #{tpu_custom_call.1} parent=1 // pred_region
      %s481 = ssub.s32 128, 128
      %482 = vsyncadd [#allocation3], %s481
      %s484 = sshll.u32 [#allocation2], 4
      %s485 = int_to_ptr.vmem [resolvable:$true] %s484
      %487 = dma.vmem_to_hbm [thread:$0]  %s485, 128, %s4, [#allocation3]
    $region21: #{tpu_custom_call.1} parent=1 // pred_fallthru
      _
    // Predicated region
    $region22: #{tpu_custom_call.1} parent=1 // pred_check
      _
    $region23: #{tpu_custom_call.1} parent=1 // pred_check_branch
      %489 = sbr.rel (0) target = $region25
    $region24: #{tpu_custom_call.1} parent=1 // pred_region
      %490 = dma.done [#allocation3], 128
    $region25: #{tpu_custom_call.1} parent=1 // pred_fallthru
      _
    %491 = vsyncpa [#allocation3], 1

</llo_original>
